<compile_context>
chip_gen: v7x
topology: tpu7x:2x2x1
jax: 0.10.0
libtpu: 0.0.40
codegen_flags: <defaults>
</compile_context>

<pallas_src>
import functools

import jax
import jax.numpy as jnp
from jax import lax
from jax.experimental import pallas as pl
from jax.experimental.pallas import tpu as pltpu


def _attn_kernel(x_ref, wqkv_ref, o_ref, *, scale, head_dim):
    # x_ref: (Bb, S, E) block; wqkv_ref: (E, 3H) fused weight; o_ref: (Bb, S, H).
    x = x_ref[...]                                  # (Bb, S, E) f32
    w = wqkv_ref[...]                               # (E, 3H)   f32

    # Fused QKV projection: one MXU pass, f32 accumulation. (Bb, S, 3H)
    qkv = lax.dot_general(
        x, w,
        dimension_numbers=(((2,), (0,)), ((), ())),
        preferred_element_type=jnp.float32)

    H = head_dim
    # Fold the 1/sqrt(H) scale into q (cheaper than scaling the (S, S) scores).
    q = (qkv[..., 0:H] * scale).astype(jnp.bfloat16)
    k = qkv[..., H:2 * H].astype(jnp.bfloat16)
    v = qkv[..., 2 * H:3 * H].astype(jnp.bfloat16)

    # Scores: (Bb, S, S). Contraction expressed directly -> no k transpose.
    # bf16 MXU inputs, f32 accumulation.
    scores = lax.dot_general(
        q, k,
        dimension_numbers=(((2,), (2,)), ((0,), (0,))),
        preferred_element_type=jnp.float32)

    # TODO(synk): optional `mask` argument not implemented (forward uses mask=None);
    # a masked variant would jnp.where(mask == 0, -inf, scores) before the row max.

    # Numerically stable softmax over the last dim, statistics kept in f32.
    scores = scores - jnp.max(scores, axis=-1, keepdims=True)
    e = jnp.exp(scores)
    attn = e * pl.reciprocal(jnp.sum(e, axis=-1, keepdims=True), approx=True)

    # Context: (Bb, S, H), bf16 MXU inputs, f32 accumulation.
    ctx = lax.dot_general(
        attn.astype(jnp.bfloat16), v,
        dimension_numbers=(((2,), (1,)), ((0,), (0,))),
        preferred_element_type=jnp.float32)

    o_ref[...] = ctx.astype(o_ref.dtype)


def self_attention_block(x, wq, wk, wv, *, batch_block=None):
    """x: (B, S, E); wq/wk/wv: (E, H) (== nn.Linear weight.T). Returns (B, S, H)."""
    B, S, E = x.shape
    H = wq.shape[1]
    scale = float(H) ** (-0.5)

    # Fuse the three projection weights into a single (E, 3H) operand.
    w_qkv = jnp.concatenate([wq, wk, wv], axis=1)

    if batch_block is None:
        # Target ~128 rows (Bb*S) per grid step to fill the MXU M dimension,
        # but keep at least 2 grid steps when B allows so both v7x TensorCores
        # get work (no-op on the single-TC v5e/v6e).
        batch_block = min(B, max(1, 128 // max(S, 1)))
        if B >= 2:
            batch_block = max(1, min(batch_block, B // 2))
        while B % batch_block:
            batch_block -= 1
    grid = (B // batch_block,)

    kernel = functools.partial(_attn_kernel, scale=scale, head_dim=H)

    return pl.pallas_call(
        kernel,
        out_shape=jax.ShapeDtypeStruct((B, S, H), x.dtype),
        grid_spec=pltpu.PrefetchScalarGridSpec(
            num_scalar_prefetch=0,
            grid=grid,
            in_specs=[
                pl.BlockSpec((batch_block, S, E), lambda b: (b, 0, 0)),  # x block
                pl.BlockSpec((E, 3 * H), lambda b: (0, 0)),              # fused W_qkv
            ],
            out_specs=pl.BlockSpec((batch_block, S, H), lambda b: (b, 0, 0)),
        ),
        compiler_params=pltpu.CompilerParams(
            dimension_semantics=("parallel",),
        ),
    )(x, w_qkv)


def _reference(x, wq, wk, wv):
    H = wq.shape[1]
    scale = float(H) ** (-0.5)
    q = x @ wq
    k = x @ wk
    v = x @ wv
    scores = jnp.einsum("bqh,bkh->bqk", q, k) * scale
    attn = jax.nn.softmax(scores, axis=-1)
    return jnp.einsum("bqk,bkh->bqh", attn, v)


if __name__ == "__main__":
    # Small shapes consistent with the module: batch=2, seq=8, emb_size=32, head_dim=16.
    B, S, E, H = 2, 8, 32, 16

    key = jax.random.PRNGKey(0)
    kx, kq, kk, kv = jax.random.split(key, 4)

    x = jax.random.normal(kx, (B, S, E), dtype=jnp.float32)
    # Deterministic synthetic weights, stored as (E, H) = weight.T relative to nn.Linear.
    bound = 1.0 / (E ** 0.5)
    wq = jax.random.uniform(kq, (E, H), jnp.float32, -bound, bound)
    wk = jax.random.uniform(kk, (E, H), jnp.float32, -bound, bound)
    wv = jax.random.uniform(kv, (E, H), jnp.float32, -bound, bound)

    out = self_attention_block(x, wq, wk, wv)
    out = jax.block_until_ready(out)

    ref = _reference(x, wq, wk, wv)
    assert out.shape == (B, S, H)
    # Tolerance accounts for bf16 MXU inputs (f32 accumulation) in QK^T / attn@V
    # and the EUP approximate reciprocal in the softmax denominator.
    assert jnp.allclose(out, ref, atol=2e-2, rtol=2e-2), "mismatch vs reference"

    print("KERNEL_OK")
</pallas_src>

<mosaic_0001>
module attributes {stable_mosaic.version = 11 : i64} {
  func.func @_attn_kernel(%arg0: i32, %arg1: memref<1x8x32xf32, #tpu.memory_space<vmem>>, %arg2: memref<32x48xf32, #tpu.memory_space<vmem>>, %arg3: memref<1x8x16xf32, #tpu.memory_space<vmem>>) attributes {dimension_semantics = [#tpu.dimension_semantics<parallel>], iteration_bounds = array<i64: 2>, scalar_prefetch = 0 : i64, scratch_operands = 0 : i64, tpu.core_type = #tpu.core_type<tc>, window_params = [{transform_indices = @transform_0, window_bounds = array<i64: 1, 8, 32>}, {pipeline_mode = #tpu.pipeline_mode<synchronous>, transform_indices = @transform_1, window_bounds = array<i64: 32, 48>}, {transform_indices = @transform_2, window_bounds = array<i64: 1, 8, 16>}]} {
    %c0 = arith.constant 0 : index
    %c0_0 = arith.constant 0 : index
    %c0_1 = arith.constant 0 : index
    %0 = vector.load %arg1[%c0, %c0_0, %c0_1] : memref<1x8x32xf32, #tpu.memory_space<vmem>>, vector<1x8x32xf32>
    %c0_2 = arith.constant 0 : index
    %c0_3 = arith.constant 0 : index
    %1 = vector.load %arg2[%c0_2, %c0_3] : memref<32x48xf32, #tpu.memory_space<vmem>>, vector<32x48xf32>
    %cst = arith.constant dense<0.000000e+00> : vector<1x8x48xf32>
    %2 = tpu.matmul %0, %1, %cst {dimension_numbers = #tpu.dot_dimension_numbers<[2], [0], [0, 1], [1], [0, 0, 0, 1, 1, 1], [], []>} : vector<1x8x32xf32>, vector<32x48xf32>, vector<1x8x48xf32> -> vector<1x8x48xf32>
    %3 = vector.extract_strided_slice %2 {offsets = [0, 0, 0], sizes = [1, 8, 16], strides = [1, 1, 1]} : vector<1x8x48xf32> to vector<1x8x16xf32>
    %cst_4 = arith.constant 2.500000e-01 : f32
    %4 = vector.broadcast %cst_4 : f32 to vector<1x8x16xf32>
    %5 = arith.mulf %3, %4 : vector<1x8x16xf32>
    %6 = arith.truncf %5 : vector<1x8x16xf32> to vector<1x8x16xbf16>
    %7 = vector.extract_strided_slice %2 {offsets = [0, 0, 16], sizes = [1, 8, 16], strides = [1, 1, 1]} : vector<1x8x48xf32> to vector<1x8x16xf32>
    %8 = arith.truncf %7 : vector<1x8x16xf32> to vector<1x8x16xbf16>
    %9 = vector.extract_strided_slice %2 {offsets = [0, 0, 32], sizes = [1, 8, 16], strides = [1, 1, 1]} : vector<1x8x48xf32> to vector<1x8x16xf32>
    %10 = arith.truncf %9 : vector<1x8x16xf32> to vector<1x8x16xbf16>
    %cst_5 = arith.constant dense<0.000000e+00> : vector<1x8x8xf32>
    %11 = tpu.matmul %6, %8, %cst_5 {dimension_numbers = #tpu.dot_dimension_numbers<[2], [2], [1], [1], [0, 0, 0, 1, 1, 1], [0], [0]>} : vector<1x8x16xbf16>, vector<1x8x16xbf16>, vector<1x8x8xf32> -> vector<1x8x8xf32>
    %cst_6 = arith.constant dense<0xFF800000> : vector<1x8xf32>
    %12 = vector.multi_reduction <maximumf>, %11, %cst_6 [2] : vector<1x8x8xf32> to vector<1x8xf32>
    %13 = vector.shape_cast %12 : vector<1x8xf32> to vector<1x8x1xf32>
    %14 = vector.broadcast %13 : vector<1x8x1xf32> to vector<1x8x8xf32>
    %15 = arith.subf %11, %14 : vector<1x8x8xf32>
    %16 = math.exp %15 : vector<1x8x8xf32>
    %cst_7 = arith.constant dense<0.000000e+00> : vector<1x8xf32>
    %17 = vector.multi_reduction <add>, %16, %cst_7 [2] : vector<1x8x8xf32> to vector<1x8xf32>
    %18 = vector.shape_cast %17 : vector<1x8xf32> to vector<1x8x1xf32>
    %19 = tpu.reciprocal %18 {approx = true} : vector<1x8x1xf32> -> vector<1x8x1xf32>
    %20 = vector.broadcast %19 : vector<1x8x1xf32> to vector<1x8x8xf32>
    %21 = arith.mulf %16, %20 : vector<1x8x8xf32>
    %22 = arith.truncf %21 : vector<1x8x8xf32> to vector<1x8x8xbf16>
    %cst_8 = arith.constant dense<0.000000e+00> : vector<1x8x16xf32>
    %23 = tpu.matmul %22, %10, %cst_8 {dimension_numbers = #tpu.dot_dimension_numbers<[2], [1], [1], [2], [0, 0, 0, 1, 1, 2], [0], [0]>} : vector<1x8x8xbf16>, vector<1x8x16xbf16>, vector<1x8x16xf32> -> vector<1x8x16xf32>
    %c0_9 = arith.constant 0 : index
    %c0_10 = arith.constant 0 : index
    %c0_11 = arith.constant 0 : index
    %24 = vector.load %arg3[%c0_9, %c0_10, %c0_11] : memref<1x8x16xf32, #tpu.memory_space<vmem>>, vector<1x8x16xf32>
    tpu.vector_store %arg3[%c0_9, %c0_10, %c0_11], %23 {strides = array<i32>} : memref<1x8x16xf32, #tpu.memory_space<vmem>>, vector<1x8x16xf32>,
    return
  }
  func.func @transform_0(%arg0: i32) -> (i32, i32, i32) {
    %c0_i32 = arith.constant 0 : i32
    %c0_i32_0 = arith.constant 0 : i32
    %c0_i32_1 = arith.constant 0 : i32
    return %arg0, %c0_i32, %c0_i32_0 : i32, i32, i32
  }
  func.func @transform_1(%arg0: i32) -> (i32, i32) {
    %c0_i32 = arith.constant 0 : i32
    %c0_i32_0 = arith.constant 0 : i32
    %c0_i32_1 = arith.constant 0 : i32
    return %c0_i32, %c0_i32_0 : i32, i32
  }
  func.func @transform_2(%arg0: i32) -> (i32, i32, i32) {
    %c0_i32 = arith.constant 0 : i32
    %c0_i32_0 = arith.constant 0 : i32
    %c0_i32_1 = arith.constant 0 : i32
    return %arg0, %c0_i32, %c0_i32_0 : i32, i32, i32
  }
}

</mosaic_0001>

<llo_original>
// kernel: tpu_custom_call.1
$region0: #{tpu_custom_call.1}
  #allocation0 [shape = 'u32[]', space=smem, size = 0x4, offset = 0x4, fixed_abs, tag = 'smem constant byte address 0x4 - core index']
  #allocation1 [shape = 'u32[144,128]{1,0:T(1,128)}', space=vmem, size = 0x12000, scoped, tag = 'internal scratch']
  %s0 = inlined_call_operand.hbm [shape: f32[2,8,32], index: 0, kind: input, shape index: {}]
  %s1 = inlined_call_operand.hbm [shape: f32[32,48], index: 1, kind: input, shape index: {}]
  %s2 = inlined_call_operand.hbm [shape: f32[2,8,16], index: 2, kind: output, shape index: {}]
  %s3 = sld [smem:[#allocation0]]
  $region49: #{tpu_custom_call.1} parent=0
    _
  %s5 = ssub.s32 1, %s3
  %s6 = scalar_select 0, %s5, %s3
  $region1: #{tpu_custom_call.1} parent=0
    #allocation2 [shape = 'u8[8192]{0}', space=vmem, size = 0x2000, scoped, tag = 'input window, operand 0']
    #allocation3 [shape = 's32[2]{0}', space=sflag, size = 0x8, scoped, tag = 'scoped memory for tpu_custom_call.1']
    #allocation4 [shape = 's32[2]{0}', space=sflag, size = 0x8, scoped, tag = 'scoped memory for tpu_custom_call.1']
    #allocation5 [shape = 'u8[16384]{0}', space=vmem, size = 0x4000, scoped, tag = 'input window, operand 1, single buffered']
    #allocation6 [shape = 's32[1]{0}', space=sflag, size = 0x4, scoped, tag = 'scoped memory for tpu_custom_call.1']
    #allocation7 [shape = 'u8[8192]{0}', space=vmem, size = 0x2000, scoped, tag = 'output window, operand 0']
    %7 = vsyncpa [#allocation3], 0
    %s8 = scalar_lea.sflag [#allocation3], 1
    %9 = vsyncpa %s8, 0
    %10 = vsyncpa [#allocation6], 0
    %11 = vsyncpa [#allocation4], 0
    %s12 = scalar_lea.sflag [#allocation4], 1
    %13 = vsyncpa %s12, 0
    loop: start=0, step=1, limit=4
    $region2: #{tpu_custom_call.1} parent=1 // loop_pre_header
      _
    $region3: #{tpu_custom_call.1} parent=1 // loop_header
      %s15 = sphi 0, %s19
      %p16 = scmp.ge.s32.totalorder %s15, 4
      %s25 = sphi 0, %s27
      %s28 = sphi 0, %s25
      %s29 = sphi 0, %s28
      %s45 = sphi 0, %s29
      %s49 = sphi 0, %s49
      %s51 = sphi 0, %s49
      %s52 = sphi 0, %s51
      %s66 = sphi 0, %s52
      %s72 = sphi 0, %s74
      %s75 = sphi 0, %s72
      %s76 = sphi 0, %s75
      %s92 = sphi 0, %s76
    $region4: #{tpu_custom_call.1} parent=1 // loop_header_branch
      %18 = sbr.rel (%p16) target = $region8
    $region5: #{tpu_custom_call.1} parent=1 // loop_body
      %s20 = ssub.s32 %s15, 1
      %s21 = ssub.s32 %s15, 2
      %s22 = sadd.s32 %s15, 1
      %s23 = ssub.s32 %s15, %s22
      %p24 = scmp.eq.s32.totalorder %s23, 0
      %s26 = sadd.s32 %s25, 1
      %s27 = scalar_select %p24, %s25, %s26
      %p30 = pneg %p24
      %p31 = scmp.eq.s32.totalorder %s15, 1
      %p32 = por %p30, %p31
      %p33 = scmp.ne.s32.totalorder %s25, %s28
      %p34 = scmp.eq.s32.totalorder %s15, 0
      %p35 = por %p33, %p34
      %p36 = scmp.ne.s32.totalorder %s25, %s28
      %p37 = scmp.eq.s32.totalorder %s20, 1
      %p38 = por %p36, %p37
      %p39 = scmp.ne.s32.totalorder %s28, %s29
      %p40 = scmp.eq.s32.totalorder %s20, 0
      %p41 = por %p39, %p40
      %p42 = scmp.ne.s32.totalorder %s28, %s29
      %p43 = scmp.eq.s32.totalorder %s21, 1
      %p44 = por %p42, %p43
      %p46 = scmp.ne.s32.totalorder %s29, %s45
      %p47 = scmp.eq.s32.totalorder %s21, 0
      %p48 = por %p46, %p47
      %s50 = sadd.s32 %s49, 1
      %p53 = scmp.eq.s32.totalorder %s15, 1
      %p54 = scmp.ne.s32.totalorder %s49, %s51
      %p55 = scmp.eq.s32.totalorder %s15, 0
      %p56 = por %p54, %p55
      %p57 = scmp.ne.s32.totalorder %s49, %s51
      %p58 = scmp.eq.s32.totalorder %s20, 1
      %p59 = por %p57, %p58
      %p60 = scmp.ne.s32.totalorder %s51, %s52
      %p61 = scmp.eq.s32.totalorder %s20, 0
      %p62 = por %p60, %p61
      %p63 = scmp.ne.s32.totalorder %s51, %s52
      %p64 = scmp.eq.s32.totalorder %s21, 1
      %p65 = por %p63, %p64
      %p67 = scmp.ne.s32.totalorder %s52, %s66
      %p68 = scmp.eq.s32.totalorder %s21, 0
      %p69 = por %p67, %p68
      %s70 = ssub.s32 %s15, %s22
      %p71 = scmp.eq.s32.totalorder %s70, 0
      %s73 = sadd.s32 %s72, 1
      %s74 = scalar_select %p71, %s72, %s73
      %p77 = pneg %p71
      %p78 = scmp.eq.s32.totalorder %s15, 1
      %p79 = por %p77, %p78
      %p80 = scmp.ne.s32.totalorder %s72, %s75
      %p81 = scmp.eq.s32.totalorder %s15, 0
      %p82 = por %p80, %p81
      %p83 = scmp.ne.s32.totalorder %s72, %s75
      %p84 = scmp.eq.s32.totalorder %s20, 1
      %p85 = por %p83, %p84
      %p86 = scmp.ne.s32.totalorder %s75, %s76
      %p87 = scmp.eq.s32.totalorder %s20, 0
      %p88 = por %p86, %p87
      %p89 = scmp.ne.s32.totalorder %s75, %s76
      %p90 = scmp.eq.s32.totalorder %s21, 1
      %p91 = por %p89, %p90
      %p93 = scmp.ne.s32.totalorder %s76, %s92
      %p94 = scmp.eq.s32.totalorder %s21, 0
      %p95 = por %p93, %p94
      %p96 = scmp.le.s32.totalorder 1, %s15
      %p97 = scmp.lt.s32.totalorder %s15, 3
      %p98 = pnand %p96, %p97
      %p99 = pneg %p98
      // Predicated region
      $region9: #{tpu_custom_call.1} parent=5 // pred_check
        _
      $region10: #{tpu_custom_call.1} parent=5 // pred_check_branch
        %101 = sbr.rel (%p98) target = $region12
      $region11: #{tpu_custom_call.1} parent=5 // pred_region
        %s102 = ssub.s32 %s15, 1
        // Predicated region
        $region13: #{tpu_custom_call.1} parent=11 // pred_check
          %p103 = pneg %p62
        $region14: #{tpu_custom_call.1} parent=11 // pred_check_branch
          %105 = sbr.rel (%p103) target = $region16
        $region15: #{tpu_custom_call.1} parent=11 // pred_region
          %s107 = ssub.s32 512, 512
          %108 = vsyncadd [#allocation6], %s107
          %s109 = sshll.u32 [#allocation5], 4
          %s110 = int_to_ptr.vmem [resolvable:$true] %s109
          %115 = dma.hbm_to_vmem [thread:$0]  %s1, 512, %s110, [#allocation6], 128, 128, 8
        $region16: #{tpu_custom_call.1} parent=11 // pred_fallthru
          _
      $region12: #{tpu_custom_call.1} parent=5 // pred_fallthru
        _
      %p116 = scmp.lt.s32.totalorder %s15, 2
      // Predicated region
      $region17: #{tpu_custom_call.1} parent=5 // pred_check
        %p117 = pneg %p116
      $region18: #{tpu_custom_call.1} parent=5 // pred_check_branch
        %119 = sbr.rel (%p117) target = $region20
      $region19: #{tpu_custom_call.1} parent=5 // pred_region
        // Predicated region
        $region21: #{tpu_custom_call.1} parent=19 // pred_check
          %p120 = pneg %p35
        $region22: #{tpu_custom_call.1} parent=19 // pred_check_branch
          %122 = sbr.rel (%p120) target = $region24
        $region23: #{tpu_custom_call.1} parent=19 // pred_region
          %s123 = sand.u32 %s25, 1
          %s124 = scalar_lea.sflag [#allocation3], %s123
          %s125 = sand.u32 %s25, 1
          %s126 = smul.addr %s125, 8
          %s127 = scalar_lea.vmem [#allocation2], %s126
          %s129 = ssub.s32 128, 128
          %130 = vsyncadd %s124, %s129
          %s131 = smul.addr %s15, 128
          %s132 = scalar_lea.hbm %s0, %s131
          %s134 = sshll.u32 %s127, 4
          %s135 = int_to_ptr.vmem [resolvable:$true] %s134
          %137 = dma.hbm_to_vmem [thread:$0]  %s132, 128, %s135, %s124
        $region24: #{tpu_custom_call.1} parent=19 // pred_fallthru
          _
      $region20: #{tpu_custom_call.1} parent=5 // pred_fallthru
        _
      %p138 = scmp.le.s32.totalorder 1, %s15
      %p139 = scmp.lt.s32.totalorder %s15, 3
      %p140 = pnand %p138, %p139
      %p141 = pneg %p140
      // Predicated region
      $region25: #{tpu_custom_call.1} parent=5 // pred_check
        _
      $region26: #{tpu_custom_call.1} parent=5 // pred_check_branch
        %143 = sbr.rel (%p140) target = $region28
      $region27: #{tpu_custom_call.1} parent=5 // pred_region
        %s144 = ssub.s32 %s15, 1
        %s145 = sand.u32 %s28, 1
        %s146 = scalar_lea.sflag [#allocation3], %s145
        %s147 = sand.u32 %s28, 1
        %s148 = smul.addr %s147, 8
        %s149 = scalar_lea.vmem [#allocation2], %s148
        // Predicated region
        $region29: #{tpu_custom_call.1} parent=27 // pred_check
          %p150 = pneg %p41
        $region30: #{tpu_custom_call.1} parent=27 // pred_check_branch
          %152 = sbr.rel (%p150) target = $region32
        $region31: #{tpu_custom_call.1} parent=27 // pred_region
          %153 = dma.done %s146, 128
        $region32: #{tpu_custom_call.1} parent=27 // pred_fallthru
          _
        // Predicated region
        $region33: #{tpu_custom_call.1} parent=27 // pred_check
          %p154 = pneg %p62
        $region34: #{tpu_custom_call.1} parent=27 // pred_check_branch
          %156 = sbr.rel (%p154) target = $region36
        $region35: #{tpu_custom_call.1} parent=27 // pred_region
          %157 = dma.done [#allocation6], 512
        $region36: #{tpu_custom_call.1} parent=27 // pred_fallthru
          _
        %s158 = sand.u32 %s28, 1
        %s159 = scalar_lea.sflag [#allocation3], %s158
        %s160 = sand.u32 %s28, 1
        %s161 = smul.addr %s160, 8
        %s162 = scalar_lea.vmem [#allocation2], %s161
        %p163 = pneg %p41
        %p164 = pneg %p38
        %p165 = pneg %p62
        %p166 = pneg %p59
        %p167 = pneg %p88
        %p168 = pneg %p85
        %s169 = sand.u32 %s75, 1
        %s170 = scalar_lea.sflag [#allocation4], %s169
        %s171 = sand.u32 %s75, 1
        %s172 = smul.addr %s171, 8
        %s173 = scalar_lea.vmem [#allocation7], %s172
        %v175 = vld [vmem:[%s149] sm:$0xff]
        %v176 = vld [vmem:[#allocation5] sm:$0xff]
        %v177 = vld [vmem:[#allocation5 + $0x8] sm:$0xff]
        %v178 = vld [vmem:[#allocation5 + $0x10] sm:$0xff]
        %v179 = vld [vmem:[#allocation5 + $0x18] sm:$0xff]
        %vm180 = vcmask 261120
        %v182 = vsel %vm180, %v175, 0
        %184 = vmatprep.subr.mxu0 0.0
        %185 = vmatpush1.msra.mxu0 %v176
        %186 = vmatprep.subr.mxu0 0.0
        %187 = vmatpush1.msra.mxu0 %v177
        %188 = vmatprep.subr.mxu0 0.0
        %189 = vmatpush1.msra.mxu0 %v178
        %190 = vmatprep.subr.mxu0 0.0
        %191 = vmatpush1.msra.mxu0 %v179
        %192 = vmatprep.subr.mxu0 0.0
        %193 = vmatpush1.msra.mxu0 0.0
        %194 = vmatprep.subr.mxu0 0.0
        %195 = vmatpush1.msra.mxu0 0.0
        %196 = vmatprep.subr.mxu0 0.0
        %197 = vmatpush1.msra.mxu0 0.0
        %198 = vmatprep.subr.mxu0 0.0
        %199 = vmatpush1.msra.mxu0 0.0
        %200 = vmatprep.subr.mxu0 0.0
        %201 = vmatpush1.msra.mxu0 0.0
        %202 = vmatprep.subr.mxu0 0.0
        %203 = vmatpush1.msra.mxu0 0.0
        %204 = vmatprep.subr.mxu0 0.0
        %205 = vmatpush1.msra.mxu0 0.0
        %206 = vmatprep.subr.mxu0 0.0
        %207 = vmatpush1.msra.mxu0 0.0
        %208 = vmatprep.subr.mxu0 0.0
        %209 = vmatpush1.msra.mxu0 0.0
        %210 = vmatprep.subr.mxu0 0.0
        %211 = vmatpush1.msra.mxu0 0.0
        %212 = vmatprep.subr.mxu0 0.0
        %213 = vmatpush1.msra.mxu0 0.0
        %214 = vmatprep.subr.mxu0 0.0
        %215 = vmatpush1.msra.mxu0 0.0
        %216 = vmatprep.subr.mxu0 0.0
        %217 = vmatpush1.msra.mxu0 0.0
        %218 = vmatprep.subr.mxu0 0.0
        %219 = vmatpush1.msra.mxu0 0.0
        %220 = vmatprep.subr.mxu0 0.0
        %221 = vmatpush1.msra.mxu0 0.0
        %222 = vmatprep.subr.mxu0 0.0
        %223 = vmatpush1.msra.mxu0 0.0
        %224 = vmatprep.subr.mxu0 0.0
        %225 = vmatpush1.msra.mxu0 0.0
        %226 = vmatprep.subr.mxu0 0.0
        %227 = vmatpush1.msra.mxu0 0.0
        %228 = vmatprep.subr.mxu0 0.0
        %229 = vmatpush1.msra.mxu0 0.0
        %230 = vmatprep.subr.mxu0 0.0
        %231 = vmatpush1.msra.mxu0 0.0
        %232 = vmatprep.subr.mxu0 0.0
        %233 = vmatpush1.msra.mxu0 0.0
        %234 = vmatprep.subr.mxu0 0.0
        %235 = vmatpush1.msra.mxu0 0.0
        %236 = vmatprep.subr.mxu0 0.0
        %237 = vmatpush1.msra.mxu0 0.0
        %238 = vmatprep.subr.mxu0 0.0
        %239 = vmatpush1.msra.mxu0 0.0
        %240 = vmatprep.subr.mxu0 0.0
        %241 = vmatpush1.msra.mxu0 0.0
        %242 = vmatprep.subr.mxu0 0.0
        %243 = vmatpush1.msra.mxu0 0.0
        %244 = vmatprep.subr.mxu0 0.0
        %245 = vmatpush1.msra.mxu0 0.0
        %246 = vmatprep.subr.mxu0 0.0
        %247 = vmatpush1.msra.mxu0 0.0
        %248 = vmatprep.mubr.f32.mxu0 0.0
        %249 = vmatmul.mubr.f32.gmra.mrb[0].mxu0 %v182
        %v250 = vpop.f32.mrb[0].mxu0
        %v251 = vadd.f32 0.0, %v250
        %v252 = vpop.f32.mrb[0].mxu0
        %253 = vdwg.mxu0
        %v254 = vmul.f32 %v251, 0.25
        %v255 = vpack.c.bf16 %v254, %v254
        %v256 = vpack.c.bf16 %v251, %v251
        %258 = vrot.lane.b32.xlu0 %v256, 112
        %v259 = vpop.permute.xlu0 %258
        %vm260 = vcmask 130048
        %v262 = vsel %vm260, %v255, 0
        %v265 = vsel %vm260, %v259, 0
        %267 = vmatprep.subr.bf16.mxu0 0
        %268 = vmatpush1.bf16.xpose.msra.mxu0 %v265
        %269 = vmatprep.subr.bf16.mxu0 0
        %270 = vmatpush1.bf16.xpose.msra.mxu0 0
        %271 = vmatprep.subr.bf16.mxu0 0
        %272 = vmatpush1.bf16.xpose.msra.mxu0 0
        %273 = vmatprep.subr.bf16.mxu0 0
        %274 = vmatpush1.bf16.xpose.msra.mxu0 0
        %275 = vmatprep.subr.bf16.mxu0 0
        %276 = vmatpush1.bf16.xpose.msra.mxu0 0
        %277 = vmatprep.subr.bf16.mxu0 0
        %278 = vmatpush1.bf16.xpose.msra.mxu0 0
        %279 = vmatprep.subr.bf16.mxu0 0
        %280 = vmatpush1.bf16.xpose.msra.mxu0 0
        %281 = vmatprep.subr.bf16.mxu0 0
        %282 = vmatpush1.bf16.xpose.msra.mxu0 0
        %283 = vmatprep.subr.bf16.mxu0 0
        %284 = vmatpush1.bf16.xpose.msra.mxu0 0
        %285 = vmatprep.subr.bf16.mxu0 0
        %286 = vmatpush1.bf16.xpose.msra.mxu0 0
        %287 = vmatprep.subr.bf16.mxu0 0
        %288 = vmatpush1.bf16.xpose.msra.mxu0 0
        %289 = vmatprep.subr.bf16.mxu0 0
        %290 = vmatpush1.bf16.xpose.msra.mxu0 0
        %291 = vmatprep.subr.bf16.mxu0 0
        %292 = vmatpush1.bf16.xpose.msra.mxu0 0
        %293 = vmatprep.subr.bf16.mxu0 0
        %294 = vmatpush1.bf16.xpose.msra.mxu0 0
        %295 = vmatprep.subr.bf16.mxu0 0
        %296 = vmatpush1.bf16.xpose.msra.mxu0 0
        %297 = vmatprep.subr.bf16.mxu0 0
        %298 = vmatpush1.bf16.xpose.msra.mxu0 0
        %299 = vmatprep.mubr.bf16.mxu0 0
        %300 = vmatmul.mubr.bf16.gmra.mrb[0].mxu0 %v262
        %v301 = vpop.f32.mrb[0].mxu0
        %v302 = vadd.f32 0.0, %v301
        %v303 = vpop.f32.mrb[0].mxu0
        %v304 = vpop.f32.mrb[0].mxu0
        %v305 = vpop.f32.mrb[0].mxu0
        %306 = vdwg.mxu0
        %vm307 = vcmask 64512
        %v308 = vsel %vm307, %v302, -inf
        %309 = vmax.xlane.f32.xlu0 %v308
        %v310 = vpop.xlane.xlu0 %309
        %v311 = vsub.f32 %v302, %v310
        %v312 = vmul.f32 %v311, 1.442695
        %v313 = vpow.pop %v312
        %v314 = vsel %vm307, %v313, 0.0
        %315 = vadd.xlane.f32.xlu0 %v314
        %v316 = vpop.xlane.xlu0 %315
        %v317 = vrcp.pop %v316
        %v318 = vmul.f32 %v313, %v317
        %v319 = vpack.c.bf16 %v318, %v318
        %320 = vrot.lane.b32.xlu0 %v256, 96
        %v321 = vpop.permute.xlu0 %320
        %v323 = vsel %vm307, %v319, 0
        %vm325 = vcmask 1043456
        %v327 = vsel %vm325, %v321, 0
        %329 = vmatprep.subr.bf16.mxu0 0
        %330 = vmatpush1.bf16.msra.mxu0 %v327
        %331 = vmatprep.subr.bf16.mxu0 0
        %332 = vmatpush1.bf16.msra.mxu0 0
        %333 = vmatprep.subr.bf16.mxu0 0
        %334 = vmatpush1.bf16.msra.mxu0 0
        %335 = vmatprep.subr.bf16.mxu0 0
        %336 = vmatpush1.bf16.msra.mxu0 0
        %337 = vmatprep.subr.bf16.mxu0 0
        %338 = vmatpush1.bf16.msra.mxu0 0
        %339 = vmatprep.subr.bf16.mxu0 0
        %340 = vmatpush1.bf16.msra.mxu0 0
        %341 = vmatprep.subr.bf16.mxu0 0
        %342 = vmatpush1.bf16.msra.mxu0 0
        %343 = vmatprep.subr.bf16.mxu0 0
        %344 = vmatpush1.bf16.msra.mxu0 0
        %345 = vmatprep.subr.bf16.mxu0 0
        %346 = vmatpush1.bf16.msra.mxu0 0
        %347 = vmatprep.subr.bf16.mxu0 0
        %348 = vmatpush1.bf16.msra.mxu0 0
        %349 = vmatprep.subr.bf16.mxu0 0
        %350 = vmatpush1.bf16.msra.mxu0 0
        %351 = vmatprep.subr.bf16.mxu0 0
        %352 = vmatpush1.bf16.msra.mxu0 0
        %353 = vmatprep.subr.bf16.mxu0 0
        %354 = vmatpush1.bf16.msra.mxu0 0
        %355 = vmatprep.subr.bf16.mxu0 0
        %356 = vmatpush1.bf16.msra.mxu0 0
        %357 = vmatprep.subr.bf16.mxu0 0
        %358 = vmatpush1.bf16.msra.mxu0 0
        %359 = vmatprep.subr.bf16.mxu0 0
        %360 = vmatpush1.bf16.msra.mxu0 0
        %361 = vmatprep.mubr.bf16.mxu0 0
        %362 = vmatmul.mubr.bf16.gmra.mrb[0].mxu0 %v323
        %v363 = vpop.f32.mrb[0].mxu0
        %v364 = vadd.f32 0.0, %v363
        %v365 = vpop.f32.mrb[0].mxu0
        %v366 = vpop.f32.mrb[0].mxu0
        %v367 = vpop.f32.mrb[0].mxu0
        %368 = vdwg.mxu0
        %369 = vst.msk [vmem:[%s173] sm:$0xff] %vm260, %v364
        %s370 = sand.u32 %s75, 1
        %s371 = scalar_lea.sflag [#allocation4], %s370
        %s372 = sand.u32 %s75, 1
        %s373 = smul.addr %s372, 8
        %s374 = scalar_lea.vmem [#allocation7], %s373
        // Predicated region
        $region37: #{tpu_custom_call.1} parent=27 // pred_check
          %p375 = pneg %p85
        $region38: #{tpu_custom_call.1} parent=27 // pred_check_branch
          %377 = sbr.rel (%p375) target = $region40
        $region39: #{tpu_custom_call.1} parent=27 // pred_region
          %s379 = ssub.s32 128, 128
          %380 = vsyncadd %s371, %s379
          %s381 = smul.addr %s20, 128
          %s382 = scalar_lea.hbm %s2, %s381
          %s384 = sshll.u32 %s374, 4
          %s385 = int_to_ptr.vmem [resolvable:$true] %s384
          %387 = dma.vmem_to_hbm [thread:$0]  %s385, 128, %s382, %s371
        $region40: #{tpu_custom_call.1} parent=27 // pred_fallthru
          _
      $region28: #{tpu_custom_call.1} parent=5 // pred_fallthru
        _
      %p388 = scmp.le.s32.totalorder 2, %s15
      // Predicated region
      $region41: #{tpu_custom_call.1} parent=5 // pred_check
        %p389 = pneg %p388
      $region42: #{tpu_custom_call.1} parent=5 // pred_check_branch
        %391 = sbr.rel (%p389) target = $region44
      $region43: #{tpu_custom_call.1} parent=5 // pred_region
        %s392 = ssub.s32 %s15, 2
        // Predicated region
        $region45: #{tpu_custom_call.1} parent=43 // pred_check
          %p393 = pneg %p91
        $region46: #{tpu_custom_call.1} parent=43 // pred_check_branch
          %395 = sbr.rel (%p393) target = $region48
        $region47: #{tpu_custom_call.1} parent=43 // pred_region
          %s396 = sand.u32 %s76, 1
          %s397 = scalar_lea.sflag [#allocation4], %s396
          %s398 = sand.u32 %s76, 1
          %s399 = smul.addr %s398, 8
          %s400 = scalar_lea.vmem [#allocation7], %s399
          %401 = dma.done %s397, 128
        $region48: #{tpu_custom_call.1} parent=43 // pred_fallthru
          _
      $region44: #{tpu_custom_call.1} parent=5 // pred_fallthru
        _
    $region6: #{tpu_custom_call.1} parent=1 // loop_footer
      %s19 = sadd.s32 1, %s15
    $region7: #{tpu_custom_call.1} parent=1 // loop_footer_branch
      %14 = sbr.rel target = $region3
    $region8: #{tpu_custom_call.1} parent=1 // loop_exit
      _
    %402 = vsyncpa [#allocation3], 1
    %s403 = scalar_lea.sflag [#allocation3], 1
    %404 = vsyncpa %s403, 1
    %405 = vsyncpa [#allocation6], 1
    %406 = vsyncpa [#allocation4], 1
    %s407 = scalar_lea.sflag [#allocation4], 1
    %408 = vsyncpa %s407, 1

</llo_original>
